<compile_context>
chip_gen: v5e
topology: v5e:2x2
jax: 0.10.0
libtpu: 0.0.40
codegen_flags: <defaults>
</compile_context>

<pallas_src>
import functools

import jax
import jax.numpy as jnp
from jax.experimental import pallas as pl
from jax.experimental.pallas import tpu as pltpu


def _round_up(n: int, m: int) -> int:
    return ((n + m - 1) // m) * m


def _mlp_kernel(x_ref, w1_ref, b1_ref, w2_ref, b2_ref, w3_ref, b3_ref, o_ref):
    # hidden_1: Linear(d_in -> 128) + ReLU   (bf16 MXU inputs, f32 accumulate)
    h1 = jnp.dot(x_ref[...], w1_ref[...], preferred_element_type=jnp.float32)
    h1 = jnp.maximum(h1 + b1_ref[...], 0.0)
    # hidden_2: Linear(128 -> 64) + ReLU
    h2 = jnp.dot(h1.astype(jnp.bfloat16), w2_ref[...],
                 preferred_element_type=jnp.float32)
    h2 = jnp.maximum(h2 + b2_ref[...], 0.0)
    # out_layer: Linear(64 -> PC_num, zero-padded to 32 lanes), no activation
    out = jnp.dot(h2.astype(jnp.bfloat16), w3_ref[...],
                  preferred_element_type=jnp.float32)
    o_ref[...] = (out + b3_ref[...]).astype(o_ref.dtype)


def _choose_tile_b(B: int) -> int:
    """Batch tile: multiple of 16 (bf16 sublane pack).  Small batches use a
    single tile; large batches are split into >= 2 grid steps (v7x megacore)
    of at most 2048 rows so per-step DMA amortizes the ~0.35us grid overhead
    while the double-buffered VMEM footprint stays ~1.5 MiB.  Tile is derived
    from ceil(B / n_steps) to minimize tail padding."""
    cap = 2048
    if B <= 512:
        return _round_up(B, 16)
    n_steps = max(2, pl.cdiv(B, cap))
    return _round_up(pl.cdiv(B, n_steps), 16)


@functools.partial(jax.jit, static_argnames=("pc_num",))
def net1_forward(x, w1, b1, w2, b2, w3, b3, *, pc_num):
    """Net1 forward.

    x : (B, FM_num*3) f32
    w1: (d_in_pad, 128) bf16    b1: (1, 128)    f32
    w2: (128, 64)       bf16    b2: (1, 64)     f32
    w3: (64, pc_pad)    bf16    b3: (1, pc_pad) f32
    Returns (B, pc_num) f32.
    """
    B, d_in = x.shape
    d_in_pad = w1.shape[0]
    pc_pad = w3.shape[1]

    tile_b = _choose_tile_b(B)
    b_pad = _round_up(B, tile_b)

    # Single fused cast+pad pass (bf16, d_in_pad lanes) instead of the old
    # 128-lane f32 pre-pad: ~2*d_in_pad bytes/row of wrapper traffic.
    x_p = jnp.pad(x.astype(jnp.bfloat16),
                  ((0, b_pad - B), (0, d_in_pad - d_in)))

    const = lambda i: (0, 0)
    out = pl.pallas_call(
        _mlp_kernel,
        out_shape=jax.ShapeDtypeStruct((b_pad, pc_pad), jnp.float32),
        grid=(b_pad // tile_b,),
        in_specs=[
            pl.BlockSpec((tile_b, d_in_pad), lambda i: (i, 0)),  # x tile (streamed)
            pl.BlockSpec((d_in_pad, 128), const),                # w1 (resident)
            pl.BlockSpec((1, 128), const),                       # b1 (resident)
            pl.BlockSpec((128, 64), const),                      # w2 (resident)
            pl.BlockSpec((1, 64), const),                        # b2 (resident)
            pl.BlockSpec((64, pc_pad), const),                   # w3 (resident)
            pl.BlockSpec((1, pc_pad), const),                    # b3 (resident)
        ],
        out_specs=pl.BlockSpec((tile_b, pc_pad), lambda i: (i, 0)),
        compiler_params=pltpu.CompilerParams(
            dimension_semantics=("parallel",),
            vmem_limit_bytes=32 * 1024 * 1024,
        ),
    )(x_p, w1, b1, w2, b2, w3, b3)

    # Narrow slice back to the logical shape (only pc_pad*4 = 128 B/row now).
    return out[:B, :pc_num]


def init_params(key, FM_num, PC_num):
    """PyTorch nn.Linear-style init (U(-1/sqrt(fan_in), +)), unpadded f32,
    weights stored as (in, out)."""
    d_in = FM_num * 3
    dims = [(d_in, 128), (128, 64), (64, PC_num)]
    params = []
    for fan_in, fan_out in dims:
        key, kw, kb = jax.random.split(key, 3)
        bound = 1.0 / jnp.sqrt(fan_in)
        w = jax.random.uniform(kw, (fan_in, fan_out), jnp.float32, -bound, bound)
        b = jax.random.uniform(kb, (1, fan_out), jnp.float32, -bound, bound)
        params += [w, b]
    return params


def prepare_params(w1, b1, w2, b2, w3, b3):
    """One-time (off hot path) weight prep:
       * w1 rows zero-padded d_in -> round_up(d_in, 16)   (math-neutral)
       * w3/b3 cols zero-padded PC_num -> round_up(PC_num, 32)  (sliced off later)
       * weights cast to bf16 (MXU inputs), biases kept f32."""
    d_in = w1.shape[0]
    pc = w3.shape[1]
    d_in_pad = max(16, _round_up(d_in, 16))
    pc_pad = _round_up(pc, 32)

    w1p = jnp.zeros((d_in_pad, 128), jnp.float32).at[:d_in, :].set(w1)
    w3p = jnp.zeros((64, pc_pad), jnp.float32).at[:, :pc].set(w3)
    b3p = jnp.zeros((1, pc_pad), jnp.float32).at[:, :pc].set(b3)

    return (w1p.astype(jnp.bfloat16), b1.astype(jnp.float32),
            w2.astype(jnp.bfloat16), b2.astype(jnp.float32),
            w3p.astype(jnp.bfloat16), b3p)


def _ref_forward_bf16(x, w1, b1, w2, b2, w3, b3):
    """Plain-JAX reference using the same bf16-in / f32-accumulate numerics."""
    h1 = jnp.dot(x.astype(jnp.bfloat16), w1.astype(jnp.bfloat16),
                 preferred_element_type=jnp.float32)
    h1 = jnp.maximum(h1 + b1, 0.0)
    h2 = jnp.dot(h1.astype(jnp.bfloat16), w2.astype(jnp.bfloat16),
                 preferred_element_type=jnp.float32)
    h2 = jnp.maximum(h2 + b2, 0.0)
    out = jnp.dot(h2.astype(jnp.bfloat16), w3.astype(jnp.bfloat16),
                  preferred_element_type=jnp.float32)
    return out + b3


if __name__ == "__main__":
    FM_num = 5      # -> input dim 15
    PC_num = 27

    key = jax.random.PRNGKey(0)
    key, kparams = jax.random.split(key)
    params = init_params(kparams, FM_num, PC_num)
    prepared = prepare_params(*params)

    # batch=8 exercises the small single-tile path; batch=600 exercises the
    # 2-step grid (megacore) path with a non-power-of-two tile (304 rows).
    for batch in (8, 600):
        key, kx = jax.random.split(key)
        x = jax.random.normal(kx, (batch, FM_num * 3), dtype=jnp.float32)

        out = net1_forward(x, *prepared, pc_num=PC_num)
        jax.block_until_ready(out)

        ref = _ref_forward_bf16(x, *params)
        assert out.shape == (batch, PC_num)
        assert jnp.allclose(out, ref, atol=2e-3, rtol=2e-3), (
            batch, float(jnp.max(jnp.abs(out - ref))))

    print("KERNEL_OK")
</pallas_src>

<mosaic_0001>
module attributes {stable_mosaic.version = 11 : i64} {
  func.func @_mlp_kernel(%arg0: i32, %arg1: memref<16x16xbf16, #tpu.memory_space<vmem>>, %arg2: memref<16x128xbf16, #tpu.memory_space<vmem>>, %arg3: memref<1x128xf32, #tpu.memory_space<vmem>>, %arg4: memref<128x64xbf16, #tpu.memory_space<vmem>>, %arg5: memref<1x64xf32, #tpu.memory_space<vmem>>, %arg6: memref<64x32xbf16, #tpu.memory_space<vmem>>, %arg7: memref<1x32xf32, #tpu.memory_space<vmem>>, %arg8: memref<16x32xf32, #tpu.memory_space<vmem>>) attributes {dimension_semantics = [#tpu.dimension_semantics<parallel>], iteration_bounds = array<i64: 1>, scalar_prefetch = 0 : i64, scratch_operands = 0 : i64, tpu.core_type = #tpu.core_type<tc>, window_params = [{transform_indices = @transform_0, window_bounds = array<i64: 16, 16>}, {pipeline_mode = #tpu.pipeline_mode<synchronous>, transform_indices = @transform_1, window_bounds = array<i64: 16, 128>}, {pipeline_mode = #tpu.pipeline_mode<synchronous>, transform_indices = @transform_2, window_bounds = array<i64: 1, 128>}, {pipeline_mode = #tpu.pipeline_mode<synchronous>, transform_indices = @transform_3, window_bounds = array<i64: 128, 64>}, {pipeline_mode = #tpu.pipeline_mode<synchronous>, transform_indices = @transform_4, window_bounds = array<i64: 1, 64>}, {pipeline_mode = #tpu.pipeline_mode<synchronous>, transform_indices = @transform_5, window_bounds = array<i64: 64, 32>}, {pipeline_mode = #tpu.pipeline_mode<synchronous>, transform_indices = @transform_6, window_bounds = array<i64: 1, 32>}, {transform_indices = @transform_7, window_bounds = array<i64: 16, 32>}]} {
    %c0 = arith.constant 0 : index
    %c0_0 = arith.constant 0 : index
    %0 = vector.load %arg1[%c0, %c0_0] : memref<16x16xbf16, #tpu.memory_space<vmem>>, vector<16x16xbf16>
    %c0_1 = arith.constant 0 : index
    %c0_2 = arith.constant 0 : index
    %1 = vector.load %arg2[%c0_1, %c0_2] : memref<16x128xbf16, #tpu.memory_space<vmem>>, vector<16x128xbf16>
    %cst = arith.constant dense<0.000000e+00> : vector<16x128xf32>
    %2 = tpu.matmul %0, %1, %cst {dimension_numbers = #tpu.dot_dimension_numbers<[1], [0], [0], [1], [0, 0, 1, 1], [], []>} : vector<16x16xbf16>, vector<16x128xbf16>, vector<16x128xf32> -> vector<16x128xf32>
    %c0_3 = arith.constant 0 : index
    %c0_4 = arith.constant 0 : index
    %3 = vector.load %arg3[%c0_3, %c0_4] : memref<1x128xf32, #tpu.memory_space<vmem>>, vector<1x128xf32>
    %4 = vector.broadcast %3 : vector<1x128xf32> to vector<16x128xf32>
    %5 = arith.addf %2, %4 : vector<16x128xf32>
    %cst_5 = arith.constant 0.000000e+00 : f32
    %6 = vector.broadcast %cst_5 : f32 to vector<16x128xf32>
    %7 = arith.maximumf %5, %6 : vector<16x128xf32>
    %8 = arith.truncf %7 : vector<16x128xf32> to vector<16x128xbf16>
    %c0_6 = arith.constant 0 : index
    %c0_7 = arith.constant 0 : index
    %9 = vector.load %arg4[%c0_6, %c0_7] : memref<128x64xbf16, #tpu.memory_space<vmem>>, vector<128x64xbf16>
    %cst_8 = arith.constant dense<0.000000e+00> : vector<16x64xf32>
    %10 = tpu.matmul %8, %9, %cst_8 {dimension_numbers = #tpu.dot_dimension_numbers<[1], [0], [0], [1], [0, 0, 1, 1], [], []>} : vector<16x128xbf16>, vector<128x64xbf16>, vector<16x64xf32> -> vector<16x64xf32>
    %c0_9 = arith.constant 0 : index
    %c0_10 = arith.constant 0 : index
    %11 = vector.load %arg5[%c0_9, %c0_10] : memref<1x64xf32, #tpu.memory_space<vmem>>, vector<1x64xf32>
    %12 = vector.broadcast %11 : vector<1x64xf32> to vector<16x64xf32>
    %13 = arith.addf %10, %12 : vector<16x64xf32>
    %cst_11 = arith.constant 0.000000e+00 : f32
    %14 = vector.broadcast %cst_11 : f32 to vector<16x64xf32>
    %15 = arith.maximumf %13, %14 : vector<16x64xf32>
    %16 = arith.truncf %15 : vector<16x64xf32> to vector<16x64xbf16>
    %c0_12 = arith.constant 0 : index
    %c0_13 = arith.constant 0 : index
    %17 = vector.load %arg6[%c0_12, %c0_13] : memref<64x32xbf16, #tpu.memory_space<vmem>>, vector<64x32xbf16>
    %cst_14 = arith.constant dense<0.000000e+00> : vector<16x32xf32>
    %18 = tpu.matmul %16, %17, %cst_14 {dimension_numbers = #tpu.dot_dimension_numbers<[1], [0], [0], [1], [0, 0, 1, 1], [], []>} : vector<16x64xbf16>, vector<64x32xbf16>, vector<16x32xf32> -> vector<16x32xf32>
    %c0_15 = arith.constant 0 : index
    %c0_16 = arith.constant 0 : index
    %19 = vector.load %arg7[%c0_15, %c0_16] : memref<1x32xf32, #tpu.memory_space<vmem>>, vector<1x32xf32>
    %20 = vector.broadcast %19 : vector<1x32xf32> to vector<16x32xf32>
    %21 = arith.addf %18, %20 : vector<16x32xf32>
    %c0_17 = arith.constant 0 : index
    %c0_18 = arith.constant 0 : index
    %22 = vector.load %arg8[%c0_17, %c0_18] : memref<16x32xf32, #tpu.memory_space<vmem>>, vector<16x32xf32>
    tpu.vector_store %arg8[%c0_17, %c0_18], %21 {strides = array<i32>} : memref<16x32xf32, #tpu.memory_space<vmem>>, vector<16x32xf32>,
    return
  }
  func.func @transform_0(%arg0: i32) -> (i32, i32) {
    %c0_i32 = arith.constant 0 : i32
    %c0_i32_0 = arith.constant 0 : i32
    return %arg0, %c0_i32 : i32, i32
  }
  func.func @transform_1(%arg0: i32) -> (i32, i32) {
    %c0_i32 = arith.constant 0 : i32
    %c0_i32_0 = arith.constant 0 : i32
    %c0_i32_1 = arith.constant 0 : i32
    return %c0_i32, %c0_i32_0 : i32, i32
  }
  func.func @transform_2(%arg0: i32) -> (i32, i32) {
    %c0_i32 = arith.constant 0 : i32
    %c0_i32_0 = arith.constant 0 : i32
    %c0_i32_1 = arith.constant 0 : i32
    return %c0_i32, %c0_i32_0 : i32, i32
  }
  func.func @transform_3(%arg0: i32) -> (i32, i32) {
    %c0_i32 = arith.constant 0 : i32
    %c0_i32_0 = arith.constant 0 : i32
    %c0_i32_1 = arith.constant 0 : i32
    return %c0_i32, %c0_i32_0 : i32, i32
  }
  func.func @transform_4(%arg0: i32) -> (i32, i32) {
    %c0_i32 = arith.constant 0 : i32
    %c0_i32_0 = arith.constant 0 : i32
    %c0_i32_1 = arith.constant 0 : i32
    return %c0_i32, %c0_i32_0 : i32, i32
  }
  func.func @transform_5(%arg0: i32) -> (i32, i32) {
    %c0_i32 = arith.constant 0 : i32
    %c0_i32_0 = arith.constant 0 : i32
    %c0_i32_1 = arith.constant 0 : i32
    return %c0_i32, %c0_i32_0 : i32, i32
  }
  func.func @transform_6(%arg0: i32) -> (i32, i32) {
    %c0_i32 = arith.constant 0 : i32
    %c0_i32_0 = arith.constant 0 : i32
    %c0_i32_1 = arith.constant 0 : i32
    return %c0_i32, %c0_i32_0 : i32, i32
  }
  func.func @transform_7(%arg0: i32) -> (i32, i32) {
    %c0_i32 = arith.constant 0 : i32
    %c0_i32_0 = arith.constant 0 : i32
    return %arg0, %c0_i32 : i32, i32
  }
}

</mosaic_0001>

<llo_original>
// kernel: net1_forward.1
$region0: #{net1_forward.1}
  #allocation0 [shape = 'u32[]', space=smem, size = 0x4, offset = 0x4, fixed_abs, tag = 'smem constant byte address 0x4 - core index']
  #allocation1 [shape = 'u32[72,128]{1,0:T(1,128)}', space=vmem, size = 0x9000, scoped, tag = 'internal scratch']
  %s0 = inlined_call_operand.vmem [shape: bf16[16,16], index: 0, kind: input, shape index: {}]
  %s1 = inlined_call_operand.vmem [shape: bf16[16,128], index: 1, kind: input, shape index: {}]
  %s2 = inlined_call_operand.vmem [shape: f32[1,128], index: 2, kind: input, shape index: {}]
  %s3 = inlined_call_operand.vmem [shape: bf16[128,64], index: 3, kind: input, shape index: {}]
  %s4 = inlined_call_operand.vmem [shape: f32[1,64], index: 4, kind: input, shape index: {}]
  %s5 = inlined_call_operand.vmem [shape: bf16[64,32], index: 5, kind: input, shape index: {}]
  %s6 = inlined_call_operand.vmem [shape: f32[1,32], index: 6, kind: input, shape index: {}]
  %s7 = inlined_call_operand.vmem [shape: f32[16,32], index: 7, kind: output, shape index: {}]
  %s8 = sld [smem:[#allocation0]]
  $region38: #{net1_forward.1} parent=0
    _
  %s10 = ssub.s32 1, %s8
  %s11 = scalar_select 0, %s10, %s8
  // Predicated region
  $region2: #{net1_forward.1} parent=0 // pred_check
    _
  $region3: #{net1_forward.1} parent=0 // pred_check_branch
    %13 = sbr.rel (0) target = $region5
  $region4: #{net1_forward.1} parent=0 // pred_region
    _
  $region5: #{net1_forward.1} parent=0 // pred_fallthru
    _
  // Predicated region
  $region6: #{net1_forward.1} parent=0 // pred_check
    _
  $region7: #{net1_forward.1} parent=0 // pred_check_branch
    %15 = sbr.rel (0) target = $region9
  $region8: #{net1_forward.1} parent=0 // pred_region
    _
  $region9: #{net1_forward.1} parent=0 // pred_fallthru
    _
  // Predicated region
  $region10: #{net1_forward.1} parent=0 // pred_check
    _
  $region11: #{net1_forward.1} parent=0 // pred_check_branch
    %17 = sbr.rel (0) target = $region13
  $region12: #{net1_forward.1} parent=0 // pred_region
    _
  $region13: #{net1_forward.1} parent=0 // pred_fallthru
    _
  // Predicated region
  $region14: #{net1_forward.1} parent=0 // pred_check
    _
  $region15: #{net1_forward.1} parent=0 // pred_check_branch
    %19 = sbr.rel (0) target = $region17
  $region16: #{net1_forward.1} parent=0 // pred_region
    _
  $region17: #{net1_forward.1} parent=0 // pred_fallthru
    _
  // Predicated region
  $region18: #{net1_forward.1} parent=0 // pred_check
    _
  $region19: #{net1_forward.1} parent=0 // pred_check_branch
    %21 = sbr.rel (0) target = $region21
  $region20: #{net1_forward.1} parent=0 // pred_region
    _
  $region21: #{net1_forward.1} parent=0 // pred_fallthru
    _
  // Predicated region
  $region22: #{net1_forward.1} parent=0 // pred_check
    _
  $region23: #{net1_forward.1} parent=0 // pred_check_branch
    %23 = sbr.rel (0) target = $region25
  $region24: #{net1_forward.1} parent=0 // pred_region
    _
  $region25: #{net1_forward.1} parent=0 // pred_fallthru
    _
  // Predicated region
  $region26: #{net1_forward.1} parent=0 // pred_check
    _
  $region27: #{net1_forward.1} parent=0 // pred_check_branch
    %25 = sbr.rel (0) target = $region29
  $region28: #{net1_forward.1} parent=0 // pred_region
    _
  $region29: #{net1_forward.1} parent=0 // pred_fallthru
    _
  %v27 = vld [vmem:[%s0] sm:$0xf]
  %v28 = vld [vmem:[%s0 + $0x4] sm:$0xf]
  %v29 = vld [vmem:[%s1] sm:$0xf]
  %v30 = vld [vmem:[%s1 + $0x4] sm:$0xf]
  %v31 = vld [vmem:[%s2] sm:$0x1]
  %v33 = vperm.slane %v31, 0
  %v37 = vunpack.c.l.b16 %v27
  %v38 = vunpack.c.l.b16 %v28
  %v39 = vpack.c.b16 %v38, %v37
  %v42 = vunpack.c.l.b16 %v29
  %v43 = vunpack.c.l.b16 %v30
  %v44 = vpack.c.b16 %v43, %v42
  %vm46 = vcmask 130048
  %v48 = vsel %vm46, %v39, 0
  %50 = vmatpush.bf16.msra.mxu0 0
  %51 = vmatpush.bf16.msra.mxu0 0
  %52 = vmatpush.bf16.msra.mxu0 0
  %53 = vmatpush.bf16.msra.mxu0 0
  %54 = vmatpush.bf16.msra.mxu0 0
  %55 = vmatpush.bf16.msra.mxu0 0
  %56 = vmatpush.bf16.msra.mxu0 0
  %57 = vmatpush.bf16.msra.mxu0 %v44
  %58 = vmatmul.bf16.gmra.mxu0 %v48
  %v59 = vpop.f32.mrf.mxu0
  %v60 = vadd.f32 %v33, %v59
  %v61 = vpop.f32.mrf.mxu0
  %v62 = vadd.f32 %v33, %v61
  %63 = vdwg.mxu0
  %v64 = vmax.f32 %v60, 0.0
  %v65 = vmax.f32 %v62, 0.0
  %v66 = vpack.c.bf16 %v65, %v64
  %v67 = vld [vmem:[%s3] sm:$0xf]
  %v68 = vld [vmem:[%s3 + $0x4] sm:$0xf]
  %v69 = vld [vmem:[%s3 + $0x8] sm:$0xf]
  %v70 = vld [vmem:[%s3 + $0xc] sm:$0xf]
  %v71 = vld [vmem:[%s3 + $0x10] sm:$0xf]
  %v72 = vld [vmem:[%s3 + $0x14] sm:$0xf]
  %v73 = vld [vmem:[%s3 + $0x18] sm:$0xf]
  %v74 = vld [vmem:[%s3 + $0x1c] sm:$0xf]
  %v75 = vld [vmem:[%s3 + $0x20] sm:$0xf]
  %v76 = vld [vmem:[%s3 + $0x24] sm:$0xf]
  %v77 = vld [vmem:[%s3 + $0x28] sm:$0xf]
  %v78 = vld [vmem:[%s3 + $0x2c] sm:$0xf]
  %v79 = vld [vmem:[%s3 + $0x30] sm:$0xf]
  %v80 = vld [vmem:[%s3 + $0x34] sm:$0xf]
  %v81 = vld [vmem:[%s3 + $0x38] sm:$0xf]
  %v82 = vld [vmem:[%s3 + $0x3c] sm:$0xf]
  %v83 = vld [vmem:[%s4] sm:$0x1]
  %v85 = vperm.slane %v83, 0
  %v103 = vunpack.c.l.b16 %v67
  %v104 = vunpack.c.l.b16 %v68
  %v105 = vunpack.c.l.b16 %v69
  %v106 = vunpack.c.l.b16 %v70
  %v107 = vunpack.c.l.b16 %v71
  %v108 = vunpack.c.l.b16 %v72
  %v109 = vunpack.c.l.b16 %v73
  %v110 = vunpack.c.l.b16 %v74
  %v111 = vunpack.c.l.b16 %v75
  %v112 = vunpack.c.l.b16 %v76
  %v113 = vunpack.c.l.b16 %v77
  %v114 = vunpack.c.l.b16 %v78
  %v115 = vunpack.c.l.b16 %v79
  %v116 = vunpack.c.l.b16 %v80
  %v117 = vunpack.c.l.b16 %v81
  %v118 = vunpack.c.l.b16 %v82
  %v119 = vpack.c.b16 %v104, %v103
  %v120 = vpack.c.b16 %v106, %v105
  %v121 = vpack.c.b16 %v108, %v107
  %v122 = vpack.c.b16 %v110, %v109
  %v123 = vpack.c.b16 %v112, %v111
  %v124 = vpack.c.b16 %v114, %v113
  %v125 = vpack.c.b16 %v116, %v115
  %v126 = vpack.c.b16 %v118, %v117
  %135 = vmatpush.bf16.msra.mxu0 %v126
  %136 = vmatpush.bf16.msra.mxu0 %v125
  %137 = vmatpush.bf16.msra.mxu0 %v124
  %138 = vmatpush.bf16.msra.mxu0 %v123
  %139 = vmatpush.bf16.msra.mxu0 %v122
  %140 = vmatpush.bf16.msra.mxu0 %v121
  %141 = vmatpush.bf16.msra.mxu0 %v120
  %142 = vmatpush.bf16.msra.mxu0 %v119
  %143 = vmatmul.bf16.gmra.mxu0 %v66
  %v144 = vpop.f32.mrf.mxu0
  %v145 = vadd.f32 %v85, %v144
  %v146 = vpop.f32.mrf.mxu0
  %v147 = vadd.f32 %v85, %v146
  %148 = vdwg.mxu0
  %v149 = vmax.f32 %v145, 0.0
  %v150 = vmax.f32 %v147, 0.0
  %v151 = vpack.c.bf16 %v150, %v149
  %v152 = vld [vmem:[%s5] sm:$0xf]
  %v153 = vld [vmem:[%s5 + $0x4] sm:$0xf]
  %v154 = vld [vmem:[%s5 + $0x8] sm:$0xf]
  %v155 = vld [vmem:[%s5 + $0xc] sm:$0xf]
  %v156 = vld [vmem:[%s5 + $0x10] sm:$0xf]
  %v157 = vld [vmem:[%s5 + $0x14] sm:$0xf]
  %v158 = vld [vmem:[%s5 + $0x18] sm:$0xf]
  %v159 = vld [vmem:[%s5 + $0x1c] sm:$0xf]
  %v160 = vld [vmem:[%s6] sm:$0x1]
  %v162 = vperm.slane %v160, 0
  %v172 = vunpack.c.l.b16 %v152
  %v173 = vunpack.c.l.b16 %v153
  %v174 = vunpack.c.l.b16 %v154
  %v175 = vunpack.c.l.b16 %v155
  %v176 = vunpack.c.l.b16 %v156
  %v177 = vunpack.c.l.b16 %v157
  %v178 = vunpack.c.l.b16 %v158
  %v179 = vunpack.c.l.b16 %v159
  %v180 = vpack.c.b16 %v173, %v172
  %v181 = vpack.c.b16 %v175, %v174
  %v182 = vpack.c.b16 %v177, %v176
  %v183 = vpack.c.b16 %v179, %v178
  %vm188 = vcmask 523264
  %v190 = vsel %vm188, %v151, 0
  %192 = vmatpush.bf16.msra.mxu0 0
  %193 = vmatpush.bf16.msra.mxu0 0
  %194 = vmatpush.bf16.msra.mxu0 0
  %195 = vmatpush.bf16.msra.mxu0 0
  %196 = vmatpush.bf16.msra.mxu0 %v183
  %197 = vmatpush.bf16.msra.mxu0 %v182
  %198 = vmatpush.bf16.msra.mxu0 %v181
  %199 = vmatpush.bf16.msra.mxu0 %v180
  %200 = vmatmul.bf16.gmra.mxu0 %v190
  %v201 = vpop.f32.mrf.mxu0
  %v202 = vadd.f32 %v162, %v201
  %v203 = vpop.f32.mrf.mxu0
  %v204 = vadd.f32 %v162, %v203
  %205 = vdwg.mxu0
  %vm206 = vcmask 261120
  %207 = vst.msk [vmem:[%s7] sm:$0xff] %vm206, %v202
  %208 = vst.msk [vmem:[%s7 + $0x8] sm:$0xff] %vm206, %v204
  // Predicated region
  $region30: #{net1_forward.1} parent=0 // pred_check
    _
  $region31: #{net1_forward.1} parent=0 // pred_check_branch
    %210 = sbr.rel (0) target = $region33
  $region32: #{net1_forward.1} parent=0 // pred_region
    _
  $region33: #{net1_forward.1} parent=0 // pred_fallthru
    _
  // Predicated region
  $region34: #{net1_forward.1} parent=0 // pred_check
    _
  $region35: #{net1_forward.1} parent=0 // pred_check_branch
    %212 = sbr.rel (0) target = $region37
  $region36: #{net1_forward.1} parent=0 // pred_region
    _
  $region37: #{net1_forward.1} parent=0 // pred_fallthru
    _

</llo_original>
